<compile_context>
chip_gen: v7x
topology: tpu7x:2x2x1
jax: 0.10.0
libtpu: 0.0.40
codegen_flags: <defaults>
</compile_context>

<pallas_src>
import math

import jax
import jax.numpy as jnp
from jax.experimental import pallas as pl
from jax.experimental.pallas import tpu as pltpu


_SMALL_INPUT_BYTES = 1 << 20  # below this, the reshape alone IS the whole op


def _copy_kernel(x_ref, o_ref):
    # Pure lane-dense copy of an already-flattened 2-D tile. No relayout work.
    o_ref[...] = x_ref[...]


def _min_sublane(itemsize: int) -> int:
    # Sub-32-bit dtypes pack along sublanes: f32 -> 8, bf16/f16 -> 16, int8/fp8 -> 32.
    return max(8, 32 // max(1, itemsize))


def _pick_lane_width(total: int):
    """Largest W in [128, 32768], multiple of 128, that divides total (or None)."""
    for w in (32768, 16384, 8192, 4096, 2048, 1024, 512, 256, 128):
        if total % w == 0:
            return w
    return None


def _pick_row_block(rows: int, row_bytes: int, itemsize: int,
                    target_bytes: int = 4 << 20) -> int:
    """Rows per block: ~4 MiB per buffer, dtype-aware sublane multiple, prefer divisor of rows."""
    msub = _min_sublane(itemsize)
    if rows <= msub:
        # Full-extent block along the row dim is always layout-legal.
        return rows
    want = min(rows, max(1, target_bytes // max(1, row_bytes)))
    tb = max(msub, (want // msub) * msub)
    if tb >= rows:
        return rows
    # Prefer a block that divides rows exactly (no masked vst.msk tail block),
    # but don't shrink below half the target size chasing a divisor.
    lo = max(msub, (tb // 2 // msub) * msub)
    cand = tb
    while cand >= lo:
        if rows % cand == 0:
            return cand
        cand -= msub
    return tb


def _pallas_copy_2d(x2: jax.Array) -> jax.Array:
    """Identity copy of a 2-D array via a tiled, double-buffered Pallas kernel."""
    rows, width = x2.shape
    itemsize = x2.dtype.itemsize
    row_bytes = width * itemsize
    tb = _pick_row_block(rows, row_bytes, itemsize)
    tile_bytes = tb * row_bytes
    nbytes = rows * row_bytes

    # Double-buffered input + output tiles, plus a little headroom.
    needed_vmem = 4 * tile_bytes + (2 << 20)
    vmem_limit = min(max(needed_vmem, 32 << 20), 64 << 20)

    grid = (pl.cdiv(rows, tb),)

    return pl.pallas_call(
        _copy_kernel,
        out_shape=jax.ShapeDtypeStruct((rows, width), x2.dtype),
        grid=grid,
        in_specs=[pl.BlockSpec((tb, width), lambda i: (i, 0))],
        out_specs=pl.BlockSpec((tb, width), lambda i: (i, 0)),
        input_output_aliases={0: 0},
        cost_estimate=pl.CostEstimate(
            flops=0, transcendentals=0, bytes_accessed=2 * nbytes),
        compiler_params=pltpu.CompilerParams(
            dimension_semantics=("parallel",),
            vmem_limit_bytes=vmem_limit,
        ),
    )(x2)


def custom_flatten(x: jax.Array, *, force_kernel: bool = False) -> jax.Array:
    """Pallas equivalent of CustomFlatten.forward: (B, *rest) -> (B, prod(rest))."""
    B = x.shape[0]
    out_dim = int(math.prod(x.shape[1:]))

    # Metadata-only row-major flatten (free in XLA). For small inputs this is
    # the entire op -- launching a copy kernel would be pure overhead.
    x2 = x.reshape(B, out_dim)
    nbytes = B * out_dim * x2.dtype.itemsize
    if not force_kernel and nbytes < _SMALL_INPUT_BYTES:
        return x2

    total = B * out_dim
    w = _pick_lane_width(total)
    if w is not None:
        # Free reshape to a lane-dense (rows, W) slab, W a large multiple of 128:
        # every tile full-size, unmasked stores, tiling independent of B/out_dim.
        flat = x2.reshape(total // w, w)
        out = _pallas_copy_2d(flat)
        return out.reshape(B, out_dim)

    # Fallback: total has no multiple-of-128 divisor; copy with full-extent
    # last dim (layout-legal by the "equal to full array dim" rule).
    return _pallas_copy_2d(x2)


class CustomFlattenPallas:
    """Mirror of the PyTorch CustomFlatten module."""

    def __init__(self, observation_shape):
        # observation_space.shape == (obs_len, channels)
        obs_len, channels = observation_shape[0], observation_shape[-1]
        # Static: no dummy forward / extra TPU compile needed.
        self.output_size = int(obs_len) * int(channels)

    def forward(self, x):
        return custom_flatten(x)


if __name__ == "__main__":
    key = jax.random.PRNGKey(0)

    # Small shapes consistent with the module: batch=2, seq=8, channels=32.
    B, S, C = 2, 8, 32
    x = jax.random.normal(key, (B, S, C), dtype=jnp.float32)

    module = CustomFlattenPallas(observation_shape=(S, C))
    assert module.output_size == S * C, (module.output_size, S * C)

    ref = x.reshape(B, S * C)

    # 1) Default path: tiny input takes the metadata-only fast path (no kernel).
    y_fast = jax.block_until_ready(module.forward(x))
    assert y_fast.shape == (B, S * C)
    assert jnp.array_equal(y_fast, ref), "fast-path flatten mismatch"

    # 2) Forced Pallas path: exercises the tiled copy kernel itself.
    y_kernel = jax.block_until_ready(custom_flatten(x, force_kernel=True))
    assert y_kernel.shape == (B, S * C)
    assert jnp.array_equal(y_kernel, ref), "kernel flatten mismatch"

    print("KERNEL_OK")
</pallas_src>

<mosaic_0001>
module attributes {stable_mosaic.version = 11 : i64} {
  func.func @_copy_kernel(%arg0: i32, %arg1: memref<1x512xf32, #tpu.memory_space<vmem>>, %arg2: memref<1x512xf32, #tpu.memory_space<vmem>>) attributes {dimension_semantics = [#tpu.dimension_semantics<parallel>], iteration_bounds = array<i64: 1>, scalar_prefetch = 0 : i64, scratch_operands = 0 : i64, tpu.core_type = #tpu.core_type<tc>, window_params = [{transform_indices = @transform_0, window_bounds = array<i64: 1, 512>}, {transform_indices = @transform_1, window_bounds = array<i64: 1, 512>}]} {
    %c0 = arith.constant 0 : index
    %c0_0 = arith.constant 0 : index
    %0 = vector.load %arg1[%c0, %c0_0] : memref<1x512xf32, #tpu.memory_space<vmem>>, vector<1x512xf32>
    %c0_1 = arith.constant 0 : index
    %c0_2 = arith.constant 0 : index
    %1 = vector.load %arg2[%c0_1, %c0_2] : memref<1x512xf32, #tpu.memory_space<vmem>>, vector<1x512xf32>
    tpu.vector_store %arg2[%c0_1, %c0_2], %0 {strides = array<i32>} : memref<1x512xf32, #tpu.memory_space<vmem>>, vector<1x512xf32>,
    return
  }
  func.func @transform_0(%arg0: i32) -> (i32, i32) {
    %c0_i32 = arith.constant 0 : i32
    %c0_i32_0 = arith.constant 0 : i32
    return %arg0, %c0_i32 : i32, i32
  }
  func.func @transform_1(%arg0: i32) -> (i32, i32) {
    %c0_i32 = arith.constant 0 : i32
    %c0_i32_0 = arith.constant 0 : i32
    return %arg0, %c0_i32 : i32, i32
  }
}

</mosaic_0001>

<llo_original>
// kernel: tpu_custom_call.1
$region0: #{tpu_custom_call.1}
  #allocation0 [shape = 'u32[]', space=smem, size = 0x4, offset = 0x4, fixed_abs, tag = 'smem constant byte address 0x4 - core index']
  #allocation1 [shape = 'u32[144,128]{1,0:T(1,128)}', space=vmem, size = 0x12000, scoped, tag = 'internal scratch']
  %s0 = inlined_call_operand.hbm [shape: f32[1,512], index: 0, kind: input, shape index: {}, may-alias: {0,1}]
  %s1 = inlined_call_operand.hbm [shape: f32[1,512], index: 1, kind: output, shape index: {}, may-alias: {0,1}]
  %s2 = sld [smem:[#allocation0]]
  $region18: #{tpu_custom_call.1} parent=0
    _
  %s4 = ssub.s32 1, %s2
  %s5 = scalar_select 0, %s4, %s2
  $region1: #{tpu_custom_call.1} parent=0
    #allocation2 [shape = 'u8[2048]{0}', space=vmem, size = 0x800, scoped, tag = 'input window, operand 0, single buffered']
    #allocation3 [shape = 's32[1]{0}', space=sflag, size = 0x4, scoped, tag = 'scoped memory for tpu_custom_call.1']
    #allocation4 [shape = 's32[1]{0}', space=sflag, size = 0x4, scoped, tag = 'scoped memory for tpu_custom_call.1']
    #allocation5 [shape = 'u8[2048]{0}', space=vmem, size = 0x800, scoped, tag = 'output window, operand 0, single buffered']
    %6 = vsyncpa [#allocation3], 0
    %7 = vsyncpa [#allocation4], 0
    // Predicated region
    $region2: #{tpu_custom_call.1} parent=1 // pred_check
      _
    $region3: #{tpu_custom_call.1} parent=1 // pred_check_branch
      %9 = sbr.rel (0) target = $region5
    $region4: #{tpu_custom_call.1} parent=1 // pred_region
      %s11 = ssub.s32 64, 64
      %12 = vsyncadd [#allocation3], %s11
      %s14 = sshll.u32 [#allocation2], 4
      %s15 = int_to_ptr.vmem [resolvable:$true] %s14
      %17 = dma.hbm_to_vmem [thread:$0]  %s0, 64, %s15, [#allocation3]
    $region5: #{tpu_custom_call.1} parent=1 // pred_fallthru
      _
    // Predicated region
    $region6: #{tpu_custom_call.1} parent=1 // pred_check
      _
    $region7: #{tpu_custom_call.1} parent=1 // pred_check_branch
      %19 = sbr.rel (0) target = $region9
    $region8: #{tpu_custom_call.1} parent=1 // pred_region
      %20 = dma.done [#allocation3], 64
    $region9: #{tpu_custom_call.1} parent=1 // pred_fallthru
      _
    %v21 = vld [vmem:[#allocation2] sm:$0xf]
    %v22 = vlaneseq
    %vm23 = vcmp.ge.s32.totalorder %v22, 0
    %vm24 = vcmp.lt.s32.totalorder %v22, 512
    %vm25 = vmand %vm23, %vm24
    %26 = vst.msk [vmem:[#allocation5] sm:$0xf] %vm25, %v21
    // Predicated region
    $region10: #{tpu_custom_call.1} parent=1 // pred_check
      _
    $region11: #{tpu_custom_call.1} parent=1 // pred_check_branch
      %28 = sbr.rel (0) target = $region13
    $region12: #{tpu_custom_call.1} parent=1 // pred_region
      %s30 = ssub.s32 64, 64
      %31 = vsyncadd [#allocation4], %s30
      %s33 = sshll.u32 [#allocation5], 4
      %s34 = int_to_ptr.vmem [resolvable:$true] %s33
      %36 = dma.vmem_to_hbm [thread:$0]  %s34, 64, %s1, [#allocation4]
    $region13: #{tpu_custom_call.1} parent=1 // pred_fallthru
      _
    // Predicated region
    $region14: #{tpu_custom_call.1} parent=1 // pred_check
      _
    $region15: #{tpu_custom_call.1} parent=1 // pred_check_branch
      %38 = sbr.rel (0) target = $region17
    $region16: #{tpu_custom_call.1} parent=1 // pred_region
      %39 = dma.done [#allocation4], 64
    $region17: #{tpu_custom_call.1} parent=1 // pred_fallthru
      _
    %40 = vsyncpa [#allocation3], 1
    %41 = vsyncpa [#allocation4], 1

</llo_original>
